<compile_context>
chip_gen: v7x
topology: tpu7x:2x2x1
jax: 0.10.0
libtpu: 0.0.40
codegen_flags: <defaults>
</compile_context>

<pallas_src>
import functools

import jax
import jax.numpy as jnp
from jax import lax
from jax.experimental import pallas as pl
from jax.experimental.pallas import tpu as pltpu

BN_EPS = 1e-5
LANE = 128
SUBLANE = 8


def _round_up(x: int, m: int) -> int:
    return ((x + m - 1) // m) * m


def _make_dan_kernel(num_topics: int, num_linear: int):
    """Pallas kernel body for a DANEncoder with `num_linear` (BN-folded) fc layers."""

    def kernel(idx_ref, ce_ref, embw1_ref, w1r_ref, w1c_ref, b1_ref, *rest):
        out_ref = rest[-1]
        layer_refs = rest[:-1]  # 2 * (num_linear - 1) refs: (W, b) per remaining layer

        idx = idx_ref[...]            # [Tn, L] int32
        ce = ce_ref[...]              # [Tn, CE_pad] f32  (covariates ++ extra_features, 0-padded)
        embw1 = embw1_ref[...]        # [V1_pad, D1_pad] f32 == emb @ W1_emb (BN-folded), row 0 zero

        tn, L = idx.shape
        v1p = embw1.shape[0]

        # --- embedding bag (concat/W1e fused): sum_l emb[idx[n,l]] @ W1e == counts @ (emb@W1e)
        # counts built from L lane-dense 2-D compares (no [N, L, V] materialization).
        vocab_iota = lax.broadcasted_iota(jnp.int32, (tn, v1p), 1)
        counts_i = (idx[:, 0:1] == vocab_iota).astype(jnp.int32)
        for l in range(1, L):  # L is small & static -> fully unrolled at trace time
            counts_i = counts_i + (idx[:, l:l + 1] == vocab_iota).astype(jnp.int32)
        counts = counts_i.astype(jnp.float32)

        # read depth = number of non-pad tokens per row (calc_readdepth=True)
        rd = jnp.sum((idx > 0).astype(jnp.float32), axis=-1, keepdims=True)  # [Tn, 1]
        # NOTE: rows that are entirely padding give rd == 0 -> inf/NaN, matching the
        # PyTorch module; padded batch rows added by the wrapper are sliced away.
        inv_rd = pl.reciprocal(rd, approx=False)
        log_rd = jnp.log(rd)                                                 # [Tn, 1]

        # --- fc stack (BN folded into W/b on the host) ----------------------------------
        # layer 0, concat-free:
        #   ave_emb @ W1e = (counts @ (emb @ W1e)) * inv_rd     (per-row scalar commutes)
        h0 = jnp.dot(counts, embw1, preferred_element_type=jnp.float32)      # [Tn, D1_pad]
        x = (h0 * inv_rd
             + log_rd * w1r_ref[...]
             + jnp.dot(ce, w1c_ref[...], preferred_element_type=jnp.float32)
             + b1_ref[...])
        if num_linear > 1:
            x = jnp.maximum(x, 0.0)   # ReLU; Dropout is identity in eval mode

        for li in range(num_linear - 1):
            w = layer_refs[2 * li][...]
            b = layer_refs[2 * li + 1][...]
            x = jnp.dot(x, w, preferred_element_type=jnp.float32) + b
            if li < num_linear - 2:
                x = jnp.maximum(x, 0.0)

        # --- head: softplus on columns [K, 2K), identity elsewhere; one lane-dense store.
        K = num_topics
        col = lax.broadcasted_iota(jnp.int32, x.shape, 1)
        sp = jnp.where(x > 20.0, x, jnp.log1p(jnp.exp(jnp.minimum(x, 20.0))))
        out_ref[...] = jnp.where((col >= K) & (col < 2 * K), sp, x)

    return kernel


def dan_encoder_forward(idx, read_depth, covariates, extra_features, params, num_topics):
    """JAX wrapper. `read_depth` is accepted for API fidelity but ignored
    (calc_readdepth=True in the reference module). `params` is a dict with
    'emb' and a list 'layers' of (W, b, bn) where bn is (gamma, beta, running_mean,
    running_var) for non-last layers and None for the last (skip_nonlin=True)."""
    del read_depth  # recomputed inside the kernel, matching calc_readdepth=True

    emb = params["emb"]
    layers = params["layers"]
    num_linear = len(layers)
    V1, E = emb.shape
    N, L = idx.shape
    C = covariates.shape[1]
    F = extra_features.shape[1]
    CE = C + F

    # ----- host-side constant folding / padding (lane-dense, 128-aligned) -------------
    V1_pad = _round_up(V1, LANE)
    CE_pad = _round_up(max(CE, 1), LANE)

    # BN(eval) fold: y = ((x@W + b) - rm) * g*rsqrt(rv+eps) + beta  ->  x@W' + b'
    folded = []
    for (w, b, bn) in layers:
        if bn is None:
            folded.append((w.astype(jnp.float32), b.astype(jnp.float32)))
        else:
            g, bt, rm, rv = bn
            s = g * lax.rsqrt(rv + BN_EPS)
            folded.append((w * s[None, :], (b - rm) * s + bt))

    out_dims = [wf.shape[1] for wf, _ in folded]
    out_pads = [_round_up(d, LANE) for d in out_dims]

    # first layer, split by input block (ave_emb | log_rd | cov/extra); the embedding
    # block of W1 is pre-multiplied into the embedding table (one fewer in-kernel matmul).
    w1, b1 = folded[0]
    d1, d1p = out_dims[0], out_pads[0]
    embw1 = emb.astype(jnp.float32) @ w1[:E]                                     # [V1, d1]
    embw1_p = jnp.zeros((V1_pad, d1p), jnp.float32).at[:V1, :d1].set(embw1)
    w1r = jnp.zeros((1, d1p), jnp.float32).at[:, :d1].set(w1[E:E + 1])
    w1c = jnp.zeros((CE_pad, d1p), jnp.float32).at[:CE, :d1].set(w1[E + 1:])
    b1p = jnp.zeros((1, d1p), jnp.float32).at[:, :d1].set(b1[None, :])

    rest_flat = []
    for li in range(1, num_linear):
        wf, bf = folded[li]
        d_in, d_out = wf.shape
        d_in_p, d_out_p = out_pads[li - 1], out_pads[li]
        rest_flat.append(jnp.zeros((d_in_p, d_out_p), jnp.float32).at[:d_in, :d_out].set(wf))
        rest_flat.append(jnp.zeros((1, d_out_p), jnp.float32).at[:, :d_out].set(bf[None, :]))

    # ----- batch tiling ----------------------------------------------------------------
    tile_n = min(512, _round_up(N, SUBLANE))
    N_pad = _round_up(N, tile_n)
    idx_p = jnp.zeros((N_pad, L), jnp.int32).at[:N].set(idx.astype(jnp.int32))
    ce = jnp.concatenate([covariates, extra_features], axis=-1).astype(jnp.float32)
    ce_p = jnp.zeros((N_pad, CE_pad), jnp.float32).at[:N, :CE].set(ce)

    OUT_pad = out_pads[-1]
    grid = (N_pad // tile_n,)

    in_arrays = [idx_p, ce_p, embw1_p, w1r, w1c, b1p, *rest_flat]
    in_specs = [
        pl.BlockSpec((tile_n, L), lambda i: (i, 0)),        # idx: tiled over batch
        pl.BlockSpec((tile_n, CE_pad), lambda i: (i, 0)),   # cov/extra: tiled over batch
    ] + [
        pl.BlockSpec(a.shape, lambda i: (0, 0))             # emb@W1 + weights: resident
        for a in in_arrays[2:]
    ]

    kernel = _make_dan_kernel(num_topics, num_linear)
    out = pl.pallas_call(
        kernel,
        out_shape=jax.ShapeDtypeStruct((N_pad, OUT_pad), jnp.float32),
        grid=grid,
        in_specs=in_specs,
        out_specs=pl.BlockSpec((tile_n, OUT_pad), lambda i: (i, 0)),
        compiler_params=pltpu.CompilerParams(
            dimension_semantics=("parallel",),
            vmem_limit_bytes=32 * 1024 * 1024,
        ),
    )(*in_arrays)

    K = num_topics
    return out[:N, :K], out[:N, K:2 * K]


def dan_encoder_reference(idx, covariates, extra_features, params, num_topics):
    """Pure-JAX reference (unfolded BN, gather-based embedding) for correctness checking."""
    emb = params["emb"]
    read_depth = jnp.sum((idx > 0).astype(jnp.float32), axis=-1, keepdims=True)
    embd = jnp.take(emb, idx, axis=0)                 # [N, L, E]
    ave = jnp.sum(embd, axis=1) / read_depth
    x = jnp.concatenate([ave, jnp.log(read_depth), covariates, extra_features], axis=-1)
    layers = params["layers"]
    n = len(layers)
    for i, (w, b, bn) in enumerate(layers):
        x = x @ w + b
        if bn is not None:
            g, bt, rm, rv = bn
            x = (x - rm) / jnp.sqrt(rv + BN_EPS) * g + bt
        if i < n - 1:
            x = jnp.maximum(x, 0.0)
    loc = x[:, :num_topics]
    scale = jax.nn.softplus(x[:, num_topics:2 * num_topics])
    return loc, scale


def init_params(key, *, num_endog_features, embedding_size, hidden, num_layers,
                num_topics, num_covariates, num_extra_features):
    """Deterministic synthetic parameters matching DANEncoder.__init__ shapes.
    Matches get_fc_stack(skip_nonlin=True): last layer is a plain Linear (no BN/ReLU)."""
    keys = jax.random.split(key, 64)
    kidx = iter(range(64))

    V1 = num_endog_features + 1
    emb = 0.1 * jax.random.normal(keys[next(kidx)], (V1, embedding_size), jnp.float32)
    emb = emb.at[0].set(0.0)  # padding_idx=0

    layer_dims = [embedding_size + 1 + num_covariates + num_extra_features,
                  *([hidden] * (num_layers - 2)),
                  2 * num_topics]
    n_lin = len(layer_dims) - 1
    layers = []
    for li, (d_in, d_out) in enumerate(zip(layer_dims[:-1], layer_dims[1:])):
        w = (1.0 / jnp.sqrt(d_in)) * jax.random.normal(keys[next(kidx)], (d_in, d_out), jnp.float32)
        b = 0.05 * jax.random.normal(keys[next(kidx)], (d_out,), jnp.float32)
        if li < n_lin - 1:
            g = 1.0 + 0.1 * jax.random.normal(keys[next(kidx)], (d_out,), jnp.float32)
            bt = 0.05 * jax.random.normal(keys[next(kidx)], (d_out,), jnp.float32)
            rm = 0.1 * jax.random.normal(keys[next(kidx)], (d_out,), jnp.float32)
            rv = 0.5 + jax.random.uniform(keys[next(kidx)], (d_out,), jnp.float32)
            bn = (g, bt, rm, rv)
        else:
            bn = None  # skip_nonlin=True -> last layer is Linear only
        layers.append((w, b, bn))

    return {"emb": emb, "layers": layers}


if __name__ == "__main__":
    # Small, module-consistent shapes.
    N = 8                      # batch
    L = 16                     # peaks (sequence of endog feature indices) per cell
    num_endog_features = 32    # vocab size (index 0 is padding)
    embedding_size = 32
    hidden = 32
    num_layers = 3             # -> 2 linear layers: [E+1+C+F, hidden, 2*num_topics]
    num_topics = 8
    num_covariates = 4
    num_extra_features = 3

    key = jax.random.PRNGKey(0)
    k_idx, k_cov, k_extra, k_par = jax.random.split(key, 4)

    idx = jax.random.randint(k_idx, (N, L), 0, num_endog_features + 1, dtype=jnp.int32)
    idx = idx.at[:, 0].set(1)  # guarantee read_depth > 0 per row
    covariates = jax.random.normal(k_cov, (N, num_covariates), jnp.float32)
    extra_features = jax.random.normal(k_extra, (N, num_extra_features), jnp.float32)
    read_depth_in = jnp.ones((N, 1), jnp.float32)  # ignored (calc_readdepth=True)

    params = init_params(
        k_par,
        num_endog_features=num_endog_features,
        embedding_size=embedding_size,
        hidden=hidden,
        num_layers=num_layers,
        num_topics=num_topics,
        num_covariates=num_covariates,
        num_extra_features=num_extra_features,
    )

    fwd = functools.partial(dan_encoder_forward, num_topics=num_topics)
    theta_loc, theta_scale = jax.jit(fwd)(idx, read_depth_in, covariates, extra_features, params)
    jax.block_until_ready((theta_loc, theta_scale))

    ref_loc, ref_scale = dan_encoder_reference(idx, covariates, extra_features, params, num_topics)
    assert theta_loc.shape == (N, num_topics) and theta_scale.shape == (N, num_topics)
    assert jnp.allclose(theta_loc, ref_loc, rtol=1e-4, atol=1e-4)
    assert jnp.allclose(theta_scale, ref_scale, rtol=1e-4, atol=1e-4)

    print("KERNEL_OK")
</pallas_src>

<mosaic_0001>
module attributes {stable_mosaic.version = 11 : i64} {
  func.func @kernel(%arg0: i32, %arg1: memref<8x16xi32, #tpu.memory_space<vmem>>, %arg2: memref<8x128xf32, #tpu.memory_space<vmem>>, %arg3: memref<128x128xf32, #tpu.memory_space<vmem>>, %arg4: memref<1x128xf32, #tpu.memory_space<vmem>>, %arg5: memref<128x128xf32, #tpu.memory_space<vmem>>, %arg6: memref<1x128xf32, #tpu.memory_space<vmem>>, %arg7: memref<128x128xf32, #tpu.memory_space<vmem>>, %arg8: memref<1x128xf32, #tpu.memory_space<vmem>>, %arg9: memref<8x128xf32, #tpu.memory_space<vmem>>) attributes {dimension_semantics = [#tpu.dimension_semantics<parallel>], iteration_bounds = array<i64: 1>, scalar_prefetch = 0 : i64, scratch_operands = 0 : i64, tpu.core_type = #tpu.core_type<tc>, window_params = [{transform_indices = @transform_0, window_bounds = array<i64: 8, 16>}, {transform_indices = @transform_1, window_bounds = array<i64: 8, 128>}, {pipeline_mode = #tpu.pipeline_mode<synchronous>, transform_indices = @transform_2, window_bounds = array<i64: 128, 128>}, {pipeline_mode = #tpu.pipeline_mode<synchronous>, transform_indices = @transform_3, window_bounds = array<i64: 1, 128>}, {pipeline_mode = #tpu.pipeline_mode<synchronous>, transform_indices = @transform_4, window_bounds = array<i64: 128, 128>}, {pipeline_mode = #tpu.pipeline_mode<synchronous>, transform_indices = @transform_5, window_bounds = array<i64: 1, 128>}, {pipeline_mode = #tpu.pipeline_mode<synchronous>, transform_indices = @transform_6, window_bounds = array<i64: 128, 128>}, {pipeline_mode = #tpu.pipeline_mode<synchronous>, transform_indices = @transform_7, window_bounds = array<i64: 1, 128>}, {transform_indices = @transform_8, window_bounds = array<i64: 8, 128>}]} {
    %c0 = arith.constant 0 : index
    %c0_0 = arith.constant 0 : index
    %0 = vector.load %arg1[%c0, %c0_0] : memref<8x16xi32, #tpu.memory_space<vmem>>, vector<8x16xi32>
    %c0_1 = arith.constant 0 : index
    %c0_2 = arith.constant 0 : index
    %1 = vector.load %arg2[%c0_1, %c0_2] : memref<8x128xf32, #tpu.memory_space<vmem>>, vector<8x128xf32>
    %c0_3 = arith.constant 0 : index
    %c0_4 = arith.constant 0 : index
    %2 = vector.load %arg3[%c0_3, %c0_4] : memref<128x128xf32, #tpu.memory_space<vmem>>, vector<128x128xf32>
    %3 = tpu.iota {dimensions = array<i32: 1>} : vector<8x128xi32>
    %4 = vector.extract_strided_slice %0 {offsets = [0, 0], sizes = [8, 1], strides = [1, 1]} : vector<8x16xi32> to vector<8x1xi32>
    %5 = vector.broadcast %4 : vector<8x1xi32> to vector<8x128xi32>
    %6 = arith.cmpi eq, %5, %3 : vector<8x128xi32>
    %7 = arith.extui %6 : vector<8x128xi1> to vector<8x128xi32>
    %8 = vector.extract_strided_slice %0 {offsets = [0, 1], sizes = [8, 1], strides = [1, 1]} : vector<8x16xi32> to vector<8x1xi32>
    %9 = vector.broadcast %8 : vector<8x1xi32> to vector<8x128xi32>
    %10 = arith.cmpi eq, %9, %3 : vector<8x128xi32>
    %11 = arith.extui %10 : vector<8x128xi1> to vector<8x128xi32>
    %12 = arith.addi %7, %11 : vector<8x128xi32>
    %13 = vector.extract_strided_slice %0 {offsets = [0, 2], sizes = [8, 1], strides = [1, 1]} : vector<8x16xi32> to vector<8x1xi32>
    %14 = vector.broadcast %13 : vector<8x1xi32> to vector<8x128xi32>
    %15 = arith.cmpi eq, %14, %3 : vector<8x128xi32>
    %16 = arith.extui %15 : vector<8x128xi1> to vector<8x128xi32>
    %17 = arith.addi %12, %16 : vector<8x128xi32>
    %18 = vector.extract_strided_slice %0 {offsets = [0, 3], sizes = [8, 1], strides = [1, 1]} : vector<8x16xi32> to vector<8x1xi32>
    %19 = vector.broadcast %18 : vector<8x1xi32> to vector<8x128xi32>
    %20 = arith.cmpi eq, %19, %3 : vector<8x128xi32>
    %21 = arith.extui %20 : vector<8x128xi1> to vector<8x128xi32>
    %22 = arith.addi %17, %21 : vector<8x128xi32>
    %23 = vector.extract_strided_slice %0 {offsets = [0, 4], sizes = [8, 1], strides = [1, 1]} : vector<8x16xi32> to vector<8x1xi32>
    %24 = vector.broadcast %23 : vector<8x1xi32> to vector<8x128xi32>
    %25 = arith.cmpi eq, %24, %3 : vector<8x128xi32>
    %26 = arith.extui %25 : vector<8x128xi1> to vector<8x128xi32>
    %27 = arith.addi %22, %26 : vector<8x128xi32>
    %28 = vector.extract_strided_slice %0 {offsets = [0, 5], sizes = [8, 1], strides = [1, 1]} : vector<8x16xi32> to vector<8x1xi32>
    %29 = vector.broadcast %28 : vector<8x1xi32> to vector<8x128xi32>
    %30 = arith.cmpi eq, %29, %3 : vector<8x128xi32>
    %31 = arith.extui %30 : vector<8x128xi1> to vector<8x128xi32>
    %32 = arith.addi %27, %31 : vector<8x128xi32>
    %33 = vector.extract_strided_slice %0 {offsets = [0, 6], sizes = [8, 1], strides = [1, 1]} : vector<8x16xi32> to vector<8x1xi32>
    %34 = vector.broadcast %33 : vector<8x1xi32> to vector<8x128xi32>
    %35 = arith.cmpi eq, %34, %3 : vector<8x128xi32>
    %36 = arith.extui %35 : vector<8x128xi1> to vector<8x128xi32>
    %37 = arith.addi %32, %36 : vector<8x128xi32>
    %38 = vector.extract_strided_slice %0 {offsets = [0, 7], sizes = [8, 1], strides = [1, 1]} : vector<8x16xi32> to vector<8x1xi32>
    %39 = vector.broadcast %38 : vector<8x1xi32> to vector<8x128xi32>
    %40 = arith.cmpi eq, %39, %3 : vector<8x128xi32>
    %41 = arith.extui %40 : vector<8x128xi1> to vector<8x128xi32>
    %42 = arith.addi %37, %41 : vector<8x128xi32>
    %43 = vector.extract_strided_slice %0 {offsets = [0, 8], sizes = [8, 1], strides = [1, 1]} : vector<8x16xi32> to vector<8x1xi32>
    %44 = vector.broadcast %43 : vector<8x1xi32> to vector<8x128xi32>
    %45 = arith.cmpi eq, %44, %3 : vector<8x128xi32>
    %46 = arith.extui %45 : vector<8x128xi1> to vector<8x128xi32>
    %47 = arith.addi %42, %46 : vector<8x128xi32>
    %48 = vector.extract_strided_slice %0 {offsets = [0, 9], sizes = [8, 1], strides = [1, 1]} : vector<8x16xi32> to vector<8x1xi32>
    %49 = vector.broadcast %48 : vector<8x1xi32> to vector<8x128xi32>
    %50 = arith.cmpi eq, %49, %3 : vector<8x128xi32>
    %51 = arith.extui %50 : vector<8x128xi1> to vector<8x128xi32>
    %52 = arith.addi %47, %51 : vector<8x128xi32>
    %53 = vector.extract_strided_slice %0 {offsets = [0, 10], sizes = [8, 1], strides = [1, 1]} : vector<8x16xi32> to vector<8x1xi32>
    %54 = vector.broadcast %53 : vector<8x1xi32> to vector<8x128xi32>
    %55 = arith.cmpi eq, %54, %3 : vector<8x128xi32>
    %56 = arith.extui %55 : vector<8x128xi1> to vector<8x128xi32>
    %57 = arith.addi %52, %56 : vector<8x128xi32>
    %58 = vector.extract_strided_slice %0 {offsets = [0, 11], sizes = [8, 1], strides = [1, 1]} : vector<8x16xi32> to vector<8x1xi32>
    %59 = vector.broadcast %58 : vector<8x1xi32> to vector<8x128xi32>
    %60 = arith.cmpi eq, %59, %3 : vector<8x128xi32>
    %61 = arith.extui %60 : vector<8x128xi1> to vector<8x128xi32>
    %62 = arith.addi %57, %61 : vector<8x128xi32>
    %63 = vector.extract_strided_slice %0 {offsets = [0, 12], sizes = [8, 1], strides = [1, 1]} : vector<8x16xi32> to vector<8x1xi32>
    %64 = vector.broadcast %63 : vector<8x1xi32> to vector<8x128xi32>
    %65 = arith.cmpi eq, %64, %3 : vector<8x128xi32>
    %66 = arith.extui %65 : vector<8x128xi1> to vector<8x128xi32>
    %67 = arith.addi %62, %66 : vector<8x128xi32>
    %68 = vector.extract_strided_slice %0 {offsets = [0, 13], sizes = [8, 1], strides = [1, 1]} : vector<8x16xi32> to vector<8x1xi32>
    %69 = vector.broadcast %68 : vector<8x1xi32> to vector<8x128xi32>
    %70 = arith.cmpi eq, %69, %3 : vector<8x128xi32>
    %71 = arith.extui %70 : vector<8x128xi1> to vector<8x128xi32>
    %72 = arith.addi %67, %71 : vector<8x128xi32>
    %73 = vector.extract_strided_slice %0 {offsets = [0, 14], sizes = [8, 1], strides = [1, 1]} : vector<8x16xi32> to vector<8x1xi32>
    %74 = vector.broadcast %73 : vector<8x1xi32> to vector<8x128xi32>
    %75 = arith.cmpi eq, %74, %3 : vector<8x128xi32>
    %76 = arith.extui %75 : vector<8x128xi1> to vector<8x128xi32>
    %77 = arith.addi %72, %76 : vector<8x128xi32>
    %78 = vector.extract_strided_slice %0 {offsets = [0, 15], sizes = [8, 1], strides = [1, 1]} : vector<8x16xi32> to vector<8x1xi32>
    %79 = vector.broadcast %78 : vector<8x1xi32> to vector<8x128xi32>
    %80 = arith.cmpi eq, %79, %3 : vector<8x128xi32>
    %81 = arith.extui %80 : vector<8x128xi1> to vector<8x128xi32>
    %82 = arith.addi %77, %81 : vector<8x128xi32>
    %83 = arith.sitofp %82 : vector<8x128xi32> to vector<8x128xf32>
    %c0_i32 = arith.constant 0 : i32
    %84 = vector.broadcast %c0_i32 : i32 to vector<8x16xi32>
    %85 = arith.cmpi sgt, %0, %84 : vector<8x16xi32>
    %86 = arith.extui %85 : vector<8x16xi1> to vector<8x16xi32>
    %87 = arith.sitofp %86 : vector<8x16xi32> to vector<8x16xf32>
    %cst = arith.constant dense<0.000000e+00> : vector<8xf32>
    %88 = vector.multi_reduction <add>, %87, %cst [1] : vector<8x16xf32> to vector<8xf32>
    %89 = vector.shape_cast %88 : vector<8xf32> to vector<8x1xf32>
    %90 = tpu.reciprocal %89 : vector<8x1xf32> -> vector<8x1xf32>
    %91 = math.log %89 : vector<8x1xf32>
    %cst_5 = arith.constant dense<0.000000e+00> : vector<8x128xf32>
    %92 = tpu.matmul %83, %2, %cst_5 {dimension_numbers = #tpu.dot_dimension_numbers<[1], [0], [0], [1], [0, 0, 1, 1], [], []>} : vector<8x128xf32>, vector<128x128xf32>, vector<8x128xf32> -> vector<8x128xf32>
    %93 = vector.broadcast %90 : vector<8x1xf32> to vector<8x128xf32>
    %94 = arith.mulf %92, %93 : vector<8x128xf32>
    %c0_6 = arith.constant 0 : index
    %c0_7 = arith.constant 0 : index
    %95 = vector.load %arg4[%c0_6, %c0_7] : memref<1x128xf32, #tpu.memory_space<vmem>>, vector<1x128xf32>
    %96 = vector.broadcast %91 : vector<8x1xf32> to vector<8x128xf32>
    %97 = vector.broadcast %95 : vector<1x128xf32> to vector<8x128xf32>
    %98 = arith.mulf %96, %97 : vector<8x128xf32>
    %99 = arith.addf %94, %98 : vector<8x128xf32>
    %c0_8 = arith.constant 0 : index
    %c0_9 = arith.constant 0 : index
    %100 = vector.load %arg5[%c0_8, %c0_9] : memref<128x128xf32, #tpu.memory_space<vmem>>, vector<128x128xf32>
    %cst_10 = arith.constant dense<0.000000e+00> : vector<8x128xf32>
    %101 = tpu.matmul %1, %100, %cst_10 {dimension_numbers = #tpu.dot_dimension_numbers<[1], [0], [0], [1], [0, 0, 1, 1], [], []>} : vector<8x128xf32>, vector<128x128xf32>, vector<8x128xf32> -> vector<8x128xf32>
    %102 = arith.addf %99, %101 : vector<8x128xf32>
    %c0_11 = arith.constant 0 : index
    %c0_12 = arith.constant 0 : index
    %103 = vector.load %arg6[%c0_11, %c0_12] : memref<1x128xf32, #tpu.memory_space<vmem>>, vector<1x128xf32>
    %104 = vector.broadcast %103 : vector<1x128xf32> to vector<8x128xf32>
    %105 = arith.addf %102, %104 : vector<8x128xf32>
    %cst_13 = arith.constant 0.000000e+00 : f32
    %106 = vector.broadcast %cst_13 : f32 to vector<8x128xf32>
    %107 = arith.maximumf %105, %106 : vector<8x128xf32>
    %c0_14 = arith.constant 0 : index
    %c0_15 = arith.constant 0 : index
    %108 = vector.load %arg7[%c0_14, %c0_15] : memref<128x128xf32, #tpu.memory_space<vmem>>, vector<128x128xf32>
    %c0_16 = arith.constant 0 : index
    %c0_17 = arith.constant 0 : index
    %109 = vector.load %arg8[%c0_16, %c0_17] : memref<1x128xf32, #tpu.memory_space<vmem>>, vector<1x128xf32>
    %cst_18 = arith.constant dense<0.000000e+00> : vector<8x128xf32>
    %110 = tpu.matmul %107, %108, %cst_18 {dimension_numbers = #tpu.dot_dimension_numbers<[1], [0], [0], [1], [0, 0, 1, 1], [], []>} : vector<8x128xf32>, vector<128x128xf32>, vector<8x128xf32> -> vector<8x128xf32>
    %111 = vector.broadcast %109 : vector<1x128xf32> to vector<8x128xf32>
    %112 = arith.addf %110, %111 : vector<8x128xf32>
    %113 = tpu.iota {dimensions = array<i32: 1>} : vector<8x128xi32>
    %cst_19 = arith.constant 2.000000e+01 : f32
    %114 = vector.broadcast %cst_19 : f32 to vector<8x128xf32>
    %115 = arith.cmpf ogt, %112, %114 : vector<8x128xf32>
    %cst_20 = arith.constant 2.000000e+01 : f32
    %116 = vector.broadcast %cst_20 : f32 to vector<8x128xf32>
    %117 = arith.minimumf %112, %116 : vector<8x128xf32>
    %118 = math.exp %117 : vector<8x128xf32>
    %119 = math.log1p %118 : vector<8x128xf32>
    %120 = arith.select %115, %112, %119 : vector<8x128xi1>, vector<8x128xf32>
    %c8_i32 = arith.constant 8 : i32
    %121 = vector.broadcast %c8_i32 : i32 to vector<8x128xi32>
    %122 = arith.cmpi sge, %113, %121 : vector<8x128xi32>
    %c16_i32 = arith.constant 16 : i32
    %123 = vector.broadcast %c16_i32 : i32 to vector<8x128xi32>
    %124 = arith.cmpi slt, %113, %123 : vector<8x128xi32>
    %125 = arith.andi %122, %124 : vector<8x128xi1>
    %126 = arith.select %125, %120, %112 : vector<8x128xi1>, vector<8x128xf32>
    %c0_21 = arith.constant 0 : index
    %c0_22 = arith.constant 0 : index
    %127 = vector.load %arg9[%c0_21, %c0_22] : memref<8x128xf32, #tpu.memory_space<vmem>>, vector<8x128xf32>
    tpu.vector_store %arg9[%c0_21, %c0_22], %126 {strides = array<i32>} : memref<8x128xf32, #tpu.memory_space<vmem>>, vector<8x128xf32>,
    return
  }
  func.func @transform_0(%arg0: i32) -> (i32, i32) {
    %c0_i32 = arith.constant 0 : i32
    %c0_i32_0 = arith.constant 0 : i32
    return %arg0, %c0_i32 : i32, i32
  }
  func.func @transform_1(%arg0: i32) -> (i32, i32) {
    %c0_i32 = arith.constant 0 : i32
    %c0_i32_0 = arith.constant 0 : i32
    return %arg0, %c0_i32 : i32, i32
  }
  func.func @transform_2(%arg0: i32) -> (i32, i32) {
    %c0_i32 = arith.constant 0 : i32
    %c0_i32_0 = arith.constant 0 : i32
    %c0_i32_1 = arith.constant 0 : i32
    return %c0_i32, %c0_i32_0 : i32, i32
  }
  func.func @transform_3(%arg0: i32) -> (i32, i32) {
    %c0_i32 = arith.constant 0 : i32
    %c0_i32_0 = arith.constant 0 : i32
    %c0_i32_1 = arith.constant 0 : i32
    return %c0_i32, %c0_i32_0 : i32, i32
  }
  func.func @transform_4(%arg0: i32) -> (i32, i32) {
    %c0_i32 = arith.constant 0 : i32
    %c0_i32_0 = arith.constant 0 : i32
    %c0_i32_1 = arith.constant 0 : i32
    return %c0_i32, %c0_i32_0 : i32, i32
  }
  func.func @transform_5(%arg0: i32) -> (i32, i32) {
    %c0_i32 = arith.constant 0 : i32
    %c0_i32_0 = arith.constant 0 : i32
    %c0_i32_1 = arith.constant 0 : i32
    return %c0_i32, %c0_i32_0 : i32, i32
  }
  func.func @transform_6(%arg0: i32) -> (i32, i32) {
    %c0_i32 = arith.constant 0 : i32
    %c0_i32_0 = arith.constant 0 : i32
    %c0_i32_1 = arith.constant 0 : i32
    return %c0_i32, %c0_i32_0 : i32, i32
  }
  func.func @transform_7(%arg0: i32) -> (i32, i32) {
    %c0_i32 = arith.constant 0 : i32
    %c0_i32_0 = arith.constant 0 : i32
    %c0_i32_1 = arith.constant 0 : i32
    return %c0_i32, %c0_i32_0 : i32, i32
  }
  func.func @transform_8(%arg0: i32) -> (i32, i32) {
    %c0_i32 = arith.constant 0 : i32
    %c0_i32_0 = arith.constant 0 : i32
    return %arg0, %c0_i32 : i32, i32
  }
}

</mosaic_0001>

<llo_original>
// kernel: dan_encoder_forward.1
$region0: #{dan_encoder_forward.1}
  #allocation0 [shape = 'u32[]', space=smem, size = 0x4, offset = 0x4, fixed_abs, tag = 'smem constant byte address 0x4 - core index']
  #allocation1 [shape = 'u32[144,128]{1,0:T(1,128)}', space=vmem, size = 0x12000, scoped, tag = 'internal scratch']
  %s0 = inlined_call_operand.vmem [shape: s32[8,16], index: 0, kind: input, shape index: {}]
  %s1 = inlined_call_operand.vmem [shape: f32[8,128], index: 1, kind: input, shape index: {}]
  %s2 = inlined_call_operand.vmem [shape: f32[128,128], index: 2, kind: input, shape index: {}]
  %s3 = inlined_call_operand.vmem [shape: f32[1,128], index: 3, kind: input, shape index: {}]
  %s4 = inlined_call_operand.vmem [shape: f32[128,128], index: 4, kind: input, shape index: {}]
  %s5 = inlined_call_operand.vmem [shape: f32[1,128], index: 5, kind: input, shape index: {}]
  %s6 = inlined_call_operand.vmem [shape: f32[128,128], index: 6, kind: input, shape index: {}]
  %s7 = inlined_call_operand.vmem [shape: f32[1,128], index: 7, kind: input, shape index: {}]
  %s8 = inlined_call_operand.vmem [shape: f32[8,128], index: 8, kind: output, shape index: {}]
  %s9 = sld [smem:[#allocation0]]
  $region42: #{dan_encoder_forward.1} parent=0
    _
  %s11 = ssub.s32 1, %s9
  %s12 = scalar_select 0, %s11, %s9
  // Predicated region
  $region2: #{dan_encoder_forward.1} parent=0 // pred_check
    _
  $region3: #{dan_encoder_forward.1} parent=0 // pred_check_branch
    %14 = sbr.rel (0) target = $region5
  $region4: #{dan_encoder_forward.1} parent=0 // pred_region
    _
  $region5: #{dan_encoder_forward.1} parent=0 // pred_fallthru
    _
  // Predicated region
  $region6: #{dan_encoder_forward.1} parent=0 // pred_check
    _
  $region7: #{dan_encoder_forward.1} parent=0 // pred_check_branch
    %16 = sbr.rel (0) target = $region9
  $region8: #{dan_encoder_forward.1} parent=0 // pred_region
    _
  $region9: #{dan_encoder_forward.1} parent=0 // pred_fallthru
    _
  // Predicated region
  $region10: #{dan_encoder_forward.1} parent=0 // pred_check
    _
  $region11: #{dan_encoder_forward.1} parent=0 // pred_check_branch
    %18 = sbr.rel (0) target = $region13
  $region12: #{dan_encoder_forward.1} parent=0 // pred_region
    _
  $region13: #{dan_encoder_forward.1} parent=0 // pred_fallthru
    _
  // Predicated region
  $region14: #{dan_encoder_forward.1} parent=0 // pred_check
    _
  $region15: #{dan_encoder_forward.1} parent=0 // pred_check_branch
    %20 = sbr.rel (0) target = $region17
  $region16: #{dan_encoder_forward.1} parent=0 // pred_region
    _
  $region17: #{dan_encoder_forward.1} parent=0 // pred_fallthru
    _
  // Predicated region
  $region18: #{dan_encoder_forward.1} parent=0 // pred_check
    _
  $region19: #{dan_encoder_forward.1} parent=0 // pred_check_branch
    %22 = sbr.rel (0) target = $region21
  $region20: #{dan_encoder_forward.1} parent=0 // pred_region
    _
  $region21: #{dan_encoder_forward.1} parent=0 // pred_fallthru
    _
  // Predicated region
  $region22: #{dan_encoder_forward.1} parent=0 // pred_check
    _
  $region23: #{dan_encoder_forward.1} parent=0 // pred_check_branch
    %24 = sbr.rel (0) target = $region25
  $region24: #{dan_encoder_forward.1} parent=0 // pred_region
    _
  $region25: #{dan_encoder_forward.1} parent=0 // pred_fallthru
    _
  // Predicated region
  $region26: #{dan_encoder_forward.1} parent=0 // pred_check
    _
  $region27: #{dan_encoder_forward.1} parent=0 // pred_check_branch
    %26 = sbr.rel (0) target = $region29
  $region28: #{dan_encoder_forward.1} parent=0 // pred_region
    _
  $region29: #{dan_encoder_forward.1} parent=0 // pred_fallthru
    _
  // Predicated region
  $region30: #{dan_encoder_forward.1} parent=0 // pred_check
    _
  $region31: #{dan_encoder_forward.1} parent=0 // pred_check_branch
    %28 = sbr.rel (0) target = $region33
  $region32: #{dan_encoder_forward.1} parent=0 // pred_region
    _
  $region33: #{dan_encoder_forward.1} parent=0 // pred_fallthru
    _
  %v29 = vld [vmem:[%s0] sm:$0xff]
  %v30 = vld [vmem:[%s1] sm:$0xff]
  %v31 = vld [vmem:[%s2] sm:$0xff]
  %v32 = vld [vmem:[%s2 + $0x8] sm:$0xff]
  %v33 = vld [vmem:[%s2 + $0x10] sm:$0xff]
  %v34 = vld [vmem:[%s2 + $0x18] sm:$0xff]
  %v35 = vld [vmem:[%s2 + $0x20] sm:$0xff]
  %v36 = vld [vmem:[%s2 + $0x28] sm:$0xff]
  %v37 = vld [vmem:[%s2 + $0x30] sm:$0xff]
  %v38 = vld [vmem:[%s2 + $0x38] sm:$0xff]
  %v39 = vld [vmem:[%s2 + $0x40] sm:$0xff]
  %v40 = vld [vmem:[%s2 + $0x48] sm:$0xff]
  %v41 = vld [vmem:[%s2 + $0x50] sm:$0xff]
  %v42 = vld [vmem:[%s2 + $0x58] sm:$0xff]
  %v43 = vld [vmem:[%s2 + $0x60] sm:$0xff]
  %v44 = vld [vmem:[%s2 + $0x68] sm:$0xff]
  %v45 = vld [vmem:[%s2 + $0x70] sm:$0xff]
  %v46 = vld [vmem:[%s2 + $0x78] sm:$0xff]
  %v47 = vlaneseq
  %v48 = vand.u32 %v47, 127
  %49 = vset.pattern.permute.xlu0 0
  %50 = vperm.xlu0 %49, %v29
  %v51 = vpop.permute.xlu0 %50
  %vm52 = vcmp.eq.s32.totalorder %v51, %v48
  %v53 = vsel %vm52, 1, 0
  %54 = vset.pattern.permute.xlu0 1
  %55 = vperm.xlu0 %54, %v29
  %v56 = vpop.permute.xlu0 %55
  %vm57 = vcmp.eq.s32.totalorder %v56, %v48
  %v58 = vsel %vm57, 1, 0
  %v59 = vadd.s32 %v53, %v58
  %60 = vset.pattern.permute.xlu0 2
  %61 = vperm.xlu0 %60, %v29
  %v62 = vpop.permute.xlu0 %61
  %vm63 = vcmp.eq.s32.totalorder %v62, %v48
  %v64 = vsel %vm63, 1, 0
  %v65 = vadd.s32 %v59, %v64
  %66 = vset.pattern.permute.xlu0 3
  %67 = vperm.xlu0 %66, %v29
  %v68 = vpop.permute.xlu0 %67
  %vm69 = vcmp.eq.s32.totalorder %v68, %v48
  %v70 = vsel %vm69, 1, 0
  %v71 = vadd.s32 %v65, %v70
  %72 = vset.pattern.permute.xlu0 4
  %73 = vperm.xlu0 %72, %v29
  %v74 = vpop.permute.xlu0 %73
  %vm75 = vcmp.eq.s32.totalorder %v74, %v48
  %v76 = vsel %vm75, 1, 0
  %v77 = vadd.s32 %v71, %v76
  %78 = vset.pattern.permute.xlu0 5
  %79 = vperm.xlu0 %78, %v29
  %v80 = vpop.permute.xlu0 %79
  %vm81 = vcmp.eq.s32.totalorder %v80, %v48
  %v82 = vsel %vm81, 1, 0
  %v83 = vadd.s32 %v77, %v82
  %84 = vset.pattern.permute.xlu0 6
  %85 = vperm.xlu0 %84, %v29
  %v86 = vpop.permute.xlu0 %85
  %vm87 = vcmp.eq.s32.totalorder %v86, %v48
  %v88 = vsel %vm87, 1, 0
  %v89 = vadd.s32 %v83, %v88
  %90 = vset.pattern.permute.xlu0 7
  %91 = vperm.xlu0 %90, %v29
  %v92 = vpop.permute.xlu0 %91
  %vm93 = vcmp.eq.s32.totalorder %v92, %v48
  %v94 = vsel %vm93, 1, 0
  %v95 = vadd.s32 %v89, %v94
  %96 = vset.pattern.permute.xlu0 8
  %97 = vperm.xlu0 %96, %v29
  %v98 = vpop.permute.xlu0 %97
  %vm99 = vcmp.eq.s32.totalorder %v98, %v48
  %v100 = vsel %vm99, 1, 0
  %v101 = vadd.s32 %v95, %v100
  %102 = vset.pattern.permute.xlu0 9
  %103 = vperm.xlu0 %102, %v29
  %v104 = vpop.permute.xlu0 %103
  %vm105 = vcmp.eq.s32.totalorder %v104, %v48
  %v106 = vsel %vm105, 1, 0
  %v107 = vadd.s32 %v101, %v106
  %108 = vset.pattern.permute.xlu0 10
  %109 = vperm.xlu0 %108, %v29
  %v110 = vpop.permute.xlu0 %109
  %vm111 = vcmp.eq.s32.totalorder %v110, %v48
  %v112 = vsel %vm111, 1, 0
  %v113 = vadd.s32 %v107, %v112
  %114 = vset.pattern.permute.xlu0 11
  %115 = vperm.xlu0 %114, %v29
  %v116 = vpop.permute.xlu0 %115
  %vm117 = vcmp.eq.s32.totalorder %v116, %v48
  %v118 = vsel %vm117, 1, 0
  %v119 = vadd.s32 %v113, %v118
  %120 = vset.pattern.permute.xlu0 12
  %121 = vperm.xlu0 %120, %v29
  %v122 = vpop.permute.xlu0 %121
  %vm123 = vcmp.eq.s32.totalorder %v122, %v48
  %v124 = vsel %vm123, 1, 0
  %v125 = vadd.s32 %v119, %v124
  %126 = vset.pattern.permute.xlu0 13
  %127 = vperm.xlu0 %126, %v29
  %v128 = vpop.permute.xlu0 %127
  %vm129 = vcmp.eq.s32.totalorder %v128, %v48
  %v130 = vsel %vm129, 1, 0
  %v131 = vadd.s32 %v125, %v130
  %132 = vset.pattern.permute.xlu0 14
  %133 = vperm.xlu0 %132, %v29
  %v134 = vpop.permute.xlu0 %133
  %vm135 = vcmp.eq.s32.totalorder %v134, %v48
  %v136 = vsel %vm135, 1, 0
  %v137 = vadd.s32 %v131, %v136
  %138 = vset.pattern.permute.xlu0 15
  %139 = vperm.xlu0 %138, %v29
  %v140 = vpop.permute.xlu0 %139
  %vm141 = vcmp.eq.s32.totalorder %v140, %v48
  %v142 = vsel %vm141, 1, 0
  %v143 = vadd.s32 %v137, %v142
  %v144 = vcvt.s32.f32 %v143
  %vm145 = vcmp.gt.s32.totalorder %v29, 0
  %v146 = vsel %vm145, 1, 0
  %v147 = vcvt.s32.f32 %v146
  %vm148 = vcmask 130048
  %v149 = vsel %vm148, %v147, 0.0
  %150 = vadd.xlane.f32.xlu0 %v149
  %v151 = vpop.xlane.xlu0 %150
  %v152 = vrcp.pop %v151
  %v153 = vlog2.pop %v151
  %v154 = vmul.f32 %v153, 0.6931472
  %155 = vmatprep.subr.mxu0 0.0
  %156 = vmatpush1.msra.mxu0 %v31
  %157 = vmatprep.subr.mxu0 0.0
  %158 = vmatpush1.msra.mxu0 %v32
  %159 = vmatprep.subr.mxu0 0.0
  %160 = vmatpush1.msra.mxu0 %v33
  %161 = vmatprep.subr.mxu0 0.0
  %162 = vmatpush1.msra.mxu0 %v34
  %163 = vmatprep.subr.mxu0 0.0
  %164 = vmatpush1.msra.mxu0 %v35
  %165 = vmatprep.subr.mxu0 0.0
  %166 = vmatpush1.msra.mxu0 %v36
  %167 = vmatprep.subr.mxu0 0.0
  %168 = vmatpush1.msra.mxu0 %v37
  %169 = vmatprep.subr.mxu0 0.0
  %170 = vmatpush1.msra.mxu0 %v38
  %171 = vmatprep.subr.mxu0 0.0
  %172 = vmatpush1.msra.mxu0 %v39
  %173 = vmatprep.subr.mxu0 0.0
  %174 = vmatpush1.msra.mxu0 %v40
  %175 = vmatprep.subr.mxu0 0.0
  %176 = vmatpush1.msra.mxu0 %v41
  %177 = vmatprep.subr.mxu0 0.0
  %178 = vmatpush1.msra.mxu0 %v42
  %179 = vmatprep.subr.mxu0 0.0
  %180 = vmatpush1.msra.mxu0 %v43
  %181 = vmatprep.subr.mxu0 0.0
  %182 = vmatpush1.msra.mxu0 %v44
  %183 = vmatprep.subr.mxu0 0.0
  %184 = vmatpush1.msra.mxu0 %v45
  %185 = vmatprep.subr.mxu0 0.0
  %186 = vmatpush1.msra.mxu0 %v46
  %187 = vmatprep.subr.mxu0 0.0
  %188 = vmatpush1.msra.mxu0 0.0
  %189 = vmatprep.subr.mxu0 0.0
  %190 = vmatpush1.msra.mxu0 0.0
  %191 = vmatprep.subr.mxu0 0.0
  %192 = vmatpush1.msra.mxu0 0.0
  %193 = vmatprep.subr.mxu0 0.0
  %194 = vmatpush1.msra.mxu0 0.0
  %195 = vmatprep.subr.mxu0 0.0
  %196 = vmatpush1.msra.mxu0 0.0
  %197 = vmatprep.subr.mxu0 0.0
  %198 = vmatpush1.msra.mxu0 0.0
  %199 = vmatprep.subr.mxu0 0.0
  %200 = vmatpush1.msra.mxu0 0.0
  %201 = vmatprep.subr.mxu0 0.0
  %202 = vmatpush1.msra.mxu0 0.0
  %203 = vmatprep.subr.mxu0 0.0
  %204 = vmatpush1.msra.mxu0 0.0
  %205 = vmatprep.subr.mxu0 0.0
  %206 = vmatpush1.msra.mxu0 0.0
  %207 = vmatprep.subr.mxu0 0.0
  %208 = vmatpush1.msra.mxu0 0.0
  %209 = vmatprep.subr.mxu0 0.0
  %210 = vmatpush1.msra.mxu0 0.0
  %211 = vmatprep.subr.mxu0 0.0
  %212 = vmatpush1.msra.mxu0 0.0
  %213 = vmatprep.subr.mxu0 0.0
  %214 = vmatpush1.msra.mxu0 0.0
  %215 = vmatprep.subr.mxu0 0.0
  %216 = vmatpush1.msra.mxu0 0.0
  %217 = vmatprep.subr.mxu0 0.0
  %218 = vmatpush1.msra.mxu0 0.0
  %219 = vmatprep.mubr.f32.mxu0 0.0
  %220 = vmatmul.mubr.f32.gmra.mrb[0].mxu0 %v144
  %v221 = vpop.f32.mrb[0].mxu0
  %v222 = vadd.f32 0.0, %v221
  %v223 = vpop.f32.mrb[0].mxu0
  %224 = vdwg.mxu0
  %v225 = vmul.f32 %v222, %v152
  %v226 = vld [vmem:[%s3] sm:$0x1]
  %v228 = vlaneseq
  %v229 = vshrl.u32 %v228, 7
  %v230 = vsub.s32 0, %v229
  %v231 = vrot.slane %v226, %v230
  %v233 = vmul.f32 %v154, %v231
  %v234 = vadd.f32 %v225, %v233
  %v235 = vld [vmem:[%s4] sm:$0xff]
  %v236 = vld [vmem:[%s4 + $0x8] sm:$0xff]
  %v237 = vld [vmem:[%s4 + $0x10] sm:$0xff]
  %v238 = vld [vmem:[%s4 + $0x18] sm:$0xff]
  %v239 = vld [vmem:[%s4 + $0x20] sm:$0xff]
  %v240 = vld [vmem:[%s4 + $0x28] sm:$0xff]
  %v241 = vld [vmem:[%s4 + $0x30] sm:$0xff]
  %v242 = vld [vmem:[%s4 + $0x38] sm:$0xff]
  %v243 = vld [vmem:[%s4 + $0x40] sm:$0xff]
  %v244 = vld [vmem:[%s4 + $0x48] sm:$0xff]
  %v245 = vld [vmem:[%s4 + $0x50] sm:$0xff]
  %v246 = vld [vmem:[%s4 + $0x58] sm:$0xff]
  %v247 = vld [vmem:[%s4 + $0x60] sm:$0xff]
  %v248 = vld [vmem:[%s4 + $0x68] sm:$0xff]
  %v249 = vld [vmem:[%s4 + $0x70] sm:$0xff]
  %v250 = vld [vmem:[%s4 + $0x78] sm:$0xff]
  %251 = vmatprep.subr.mxu0 0.0
  %252 = vmatpush1.msra.mxu0 %v235
  %253 = vmatprep.subr.mxu0 0.0
  %254 = vmatpush1.msra.mxu0 %v236
  %255 = vmatprep.subr.mxu0 0.0
  %256 = vmatpush1.msra.mxu0 %v237
  %257 = vmatprep.subr.mxu0 0.0
  %258 = vmatpush1.msra.mxu0 %v238
  %259 = vmatprep.subr.mxu0 0.0
  %260 = vmatpush1.msra.mxu0 %v239
  %261 = vmatprep.subr.mxu0 0.0
  %262 = vmatpush1.msra.mxu0 %v240
  %263 = vmatprep.subr.mxu0 0.0
  %264 = vmatpush1.msra.mxu0 %v241
  %265 = vmatprep.subr.mxu0 0.0
  %266 = vmatpush1.msra.mxu0 %v242
  %267 = vmatprep.subr.mxu0 0.0
  %268 = vmatpush1.msra.mxu0 %v243
  %269 = vmatprep.subr.mxu0 0.0
  %270 = vmatpush1.msra.mxu0 %v244
  %271 = vmatprep.subr.mxu0 0.0
  %272 = vmatpush1.msra.mxu0 %v245
  %273 = vmatprep.subr.mxu0 0.0
  %274 = vmatpush1.msra.mxu0 %v246
  %275 = vmatprep.subr.mxu0 0.0
  %276 = vmatpush1.msra.mxu0 %v247
  %277 = vmatprep.subr.mxu0 0.0
  %278 = vmatpush1.msra.mxu0 %v248
  %279 = vmatprep.subr.mxu0 0.0
  %280 = vmatpush1.msra.mxu0 %v249
  %281 = vmatprep.subr.mxu0 0.0
  %282 = vmatpush1.msra.mxu0 %v250
  %283 = vmatprep.subr.mxu0 0.0
  %284 = vmatpush1.msra.mxu0 0.0
  %285 = vmatprep.subr.mxu0 0.0
  %286 = vmatpush1.msra.mxu0 0.0
  %287 = vmatprep.subr.mxu0 0.0
  %288 = vmatpush1.msra.mxu0 0.0
  %289 = vmatprep.subr.mxu0 0.0
  %290 = vmatpush1.msra.mxu0 0.0
  %291 = vmatprep.subr.mxu0 0.0
  %292 = vmatpush1.msra.mxu0 0.0
  %293 = vmatprep.subr.mxu0 0.0
  %294 = vmatpush1.msra.mxu0 0.0
  %295 = vmatprep.subr.mxu0 0.0
  %296 = vmatpush1.msra.mxu0 0.0
  %297 = vmatprep.subr.mxu0 0.0
  %298 = vmatpush1.msra.mxu0 0.0
  %299 = vmatprep.subr.mxu0 0.0
  %300 = vmatpush1.msra.mxu0 0.0
  %301 = vmatprep.subr.mxu0 0.0
  %302 = vmatpush1.msra.mxu0 0.0
  %303 = vmatprep.subr.mxu0 0.0
  %304 = vmatpush1.msra.mxu0 0.0
  %305 = vmatprep.subr.mxu0 0.0
  %306 = vmatpush1.msra.mxu0 0.0
  %307 = vmatprep.subr.mxu0 0.0
  %308 = vmatpush1.msra.mxu0 0.0
  %309 = vmatprep.subr.mxu0 0.0
  %310 = vmatpush1.msra.mxu0 0.0
  %311 = vmatprep.subr.mxu0 0.0
  %312 = vmatpush1.msra.mxu0 0.0
  %313 = vmatprep.subr.mxu0 0.0
  %314 = vmatpush1.msra.mxu0 0.0
  %315 = vmatprep.mubr.f32.mxu0 0.0
  %316 = vmatmul.mubr.f32.gmra.mrb[0].mxu0 %v30
  %v317 = vpop.f32.mrb[0].mxu0
  %v318 = vadd.f32 0.0, %v317
  %v319 = vpop.f32.mrb[0].mxu0
  %320 = vdwg.mxu0
  %v321 = vadd.f32 %v234, %v318
  %v322 = vld [vmem:[%s5] sm:$0x1]
  %v324 = vlaneseq
  %v325 = vshrl.u32 %v324, 7
  %v326 = vsub.s32 0, %v325
  %v327 = vrot.slane %v322, %v326
  %v329 = vadd.f32 %v321, %v327
  %v330 = vmax.f32 %v329, 0.0
  %v331 = vld [vmem:[%s6] sm:$0xff]
  %v332 = vld [vmem:[%s6 + $0x8] sm:$0xff]
  %v333 = vld [vmem:[%s6 + $0x10] sm:$0xff]
  %v334 = vld [vmem:[%s6 + $0x18] sm:$0xff]
  %v335 = vld [vmem:[%s6 + $0x20] sm:$0xff]
  %v336 = vld [vmem:[%s6 + $0x28] sm:$0xff]
  %v337 = vld [vmem:[%s6 + $0x30] sm:$0xff]
  %v338 = vld [vmem:[%s6 + $0x38] sm:$0xff]
  %v339 = vld [vmem:[%s6 + $0x40] sm:$0xff]
  %v340 = vld [vmem:[%s6 + $0x48] sm:$0xff]
  %v341 = vld [vmem:[%s6 + $0x50] sm:$0xff]
  %v342 = vld [vmem:[%s6 + $0x58] sm:$0xff]
  %v343 = vld [vmem:[%s6 + $0x60] sm:$0xff]
  %v344 = vld [vmem:[%s6 + $0x68] sm:$0xff]
  %v345 = vld [vmem:[%s6 + $0x70] sm:$0xff]
  %v346 = vld [vmem:[%s6 + $0x78] sm:$0xff]
  %v347 = vld [vmem:[%s7] sm:$0x1]
  %v349 = vlaneseq
  %v350 = vshrl.u32 %v349, 7
  %v351 = vsub.s32 0, %v350
  %v352 = vrot.slane %v347, %v351
  %354 = vmatprep.subr.mxu0 0.0
  %355 = vmatpush1.msra.mxu0 %v331
  %356 = vmatprep.subr.mxu0 0.0
  %357 = vmatpush1.msra.mxu0 %v332
  %358 = vmatprep.subr.mxu0 0.0
  %359 = vmatpush1.msra.mxu0 %v333
  %360 = vmatprep.subr.mxu0 0.0
  %361 = vmatpush1.msra.mxu0 %v334
  %362 = vmatprep.subr.mxu0 0.0
  %363 = vmatpush1.msra.mxu0 %v335
  %364 = vmatprep.subr.mxu0 0.0
  %365 = vmatpush1.msra.mxu0 %v336
  %366 = vmatprep.subr.mxu0 0.0
  %367 = vmatpush1.msra.mxu0 %v337
  %368 = vmatprep.subr.mxu0 0.0
  %369 = vmatpush1.msra.mxu0 %v338
  %370 = vmatprep.subr.mxu0 0.0
  %371 = vmatpush1.msra.mxu0 %v339
  %372 = vmatprep.subr.mxu0 0.0
  %373 = vmatpush1.msra.mxu0 %v340
  %374 = vmatprep.subr.mxu0 0.0
  %375 = vmatpush1.msra.mxu0 %v341
  %376 = vmatprep.subr.mxu0 0.0
  %377 = vmatpush1.msra.mxu0 %v342
  %378 = vmatprep.subr.mxu0 0.0
  %379 = vmatpush1.msra.mxu0 %v343
  %380 = vmatprep.subr.mxu0 0.0
  %381 = vmatpush1.msra.mxu0 %v344
  %382 = vmatprep.subr.mxu0 0.0
  %383 = vmatpush1.msra.mxu0 %v345
  %384 = vmatprep.subr.mxu0 0.0
  %385 = vmatpush1.msra.mxu0 %v346
  %386 = vmatprep.subr.mxu0 0.0
  %387 = vmatpush1.msra.mxu0 0.0
  %388 = vmatprep.subr.mxu0 0.0
  %389 = vmatpush1.msra.mxu0 0.0
  %390 = vmatprep.subr.mxu0 0.0
  %391 = vmatpush1.msra.mxu0 0.0
  %392 = vmatprep.subr.mxu0 0.0
  %393 = vmatpush1.msra.mxu0 0.0
  %394 = vmatprep.subr.mxu0 0.0
  %395 = vmatpush1.msra.mxu0 0.0
  %396 = vmatprep.subr.mxu0 0.0
  %397 = vmatpush1.msra.mxu0 0.0
  %398 = vmatprep.subr.mxu0 0.0
  %399 = vmatpush1.msra.mxu0 0.0
  %400 = vmatprep.subr.mxu0 0.0
  %401 = vmatpush1.msra.mxu0 0.0
  %402 = vmatprep.subr.mxu0 0.0
  %403 = vmatpush1.msra.mxu0 0.0
  %404 = vmatprep.subr.mxu0 0.0
  %405 = vmatpush1.msra.mxu0 0.0
  %406 = vmatprep.subr.mxu0 0.0
  %407 = vmatpush1.msra.mxu0 0.0
  %408 = vmatprep.subr.mxu0 0.0
  %409 = vmatpush1.msra.mxu0 0.0
  %410 = vmatprep.subr.mxu0 0.0
  %411 = vmatpush1.msra.mxu0 0.0
  %412 = vmatprep.subr.mxu0 0.0
  %413 = vmatpush1.msra.mxu0 0.0
  %414 = vmatprep.subr.mxu0 0.0
  %415 = vmatpush1.msra.mxu0 0.0
  %416 = vmatprep.subr.mxu0 0.0
  %417 = vmatpush1.msra.mxu0 0.0
  %418 = vmatprep.mubr.f32.mxu0 0.0
  %419 = vmatmul.mubr.f32.gmra.mrb[0].mxu0 %v330
  %v420 = vpop.f32.mrb[0].mxu0
  %v421 = vadd.f32 %v352, %v420
  %v422 = vpop.f32.mrb[0].mxu0
  %423 = vdwg.mxu0
  %vm424 = vcmp.gt.f32.partialorder %v421, 20.0
  %v425 = vmin.f32 %v421, 20.0
  %v426 = vmul.f32 %v425, 1.442695
  %v427 = vpow.pop %v426
  %v428 = vadd.f32 %v427, 1.0
  %v429 = vlog2.pop %v428
  %v430 = vmul.f32 %v429, 0.6931472
  %v431 = vmul.f32 -0.5, %v427
  %v432 = vadd.f32 %v431, 1.0
  %v433 = vmul.f32 %v432, %v427
  %v434 = vand.u32 2147483647, %v427
  %vm435 = vcmp.lt.f32.partialorder %v434, 0.0004427343
  %v436 = vsel %vm435, %v433, %v430
  %v437 = vsel %vm424, %v421, %v436
  %vm438 = vcmp.ge.s32.totalorder %v48, 8
  %vm439 = vcmp.lt.s32.totalorder %v48, 16
  %vm440 = vmand %vm438, %vm439
  %v441 = vsel %vm440, %v437, %v421
  %442 = vst [vmem:[%s8] sm:$0xff] %v441
  // Predicated region
  $region34: #{dan_encoder_forward.1} parent=0 // pred_check
    _
  $region35: #{dan_encoder_forward.1} parent=0 // pred_check_branch
    %444 = sbr.rel (0) target = $region37
  $region36: #{dan_encoder_forward.1} parent=0 // pred_region
    _
  $region37: #{dan_encoder_forward.1} parent=0 // pred_fallthru
    _
  // Predicated region
  $region38: #{dan_encoder_forward.1} parent=0 // pred_check
    _
  $region39: #{dan_encoder_forward.1} parent=0 // pred_check_branch
    %446 = sbr.rel (0) target = $region41
  $region40: #{dan_encoder_forward.1} parent=0 // pred_region
    _
  $region41: #{dan_encoder_forward.1} parent=0 // pred_fallthru
    _

</llo_original>
